<compile_context>
chip_gen: v6e
topology: v6e:2x2x1
jax: 0.10.0
libtpu: 0.0.40
codegen_flags: <defaults>
</compile_context>

<pallas_src>
import functools

import jax
import jax.numpy as jnp
from jax.experimental import pallas as pl
from jax.experimental.pallas import tpu as pltpu

INPUT_SIZE = 22
HIDDEN = 50
NUM_CLASSES = 16

HIDDEN_PAD = 128   # lane-aligned hidden width (zero-padded)
OUT_PAD = 128      # lane-aligned output width (zero-padded, sliced in wrapper)


def _round_up(n: int, m: int) -> int:
    return (n + m - 1) // m * m


def mlp_kernel(x_ref, w1_ref, b1_ref, w2_ref, b2_ref, o_ref):
    # x:(TB, 22) bf16   w1:(22, 128) bf16   b1:(1, 128) f32
    # w2:(128, 128) bf16   b2:(1, 128) f32   o:(TB, 128) f32
    h = jnp.dot(x_ref[...], w1_ref[...],
                preferred_element_type=jnp.float32)          # (TB, 128) f32
    h = jnp.maximum(h + b1_ref[...], 0.0)                    # bias + ReLU in f32
    y = jnp.dot(h.astype(w2_ref.dtype), w2_ref[...],
                preferred_element_type=jnp.float32)          # (TB, 128) f32
    o_ref[...] = (y + b2_ref[...]).astype(o_ref.dtype)       # lane-dense store


@functools.partial(jax.jit, static_argnames=("tb",))
def nn_forward(x, w1, b1, w2, b2, *, tb=1024):
    """x: (B, 22) f32; w1: (22, 50); b1: (50,)|(1,50); w2: (50, 16); b2: (16,)|(1,16)."""
    batch = x.shape[0]

    # --- host/XLA-side packing: cast + zero-pad to lane-aligned shapes ---
    b1 = jnp.reshape(b1, (1, HIDDEN)).astype(jnp.float32)
    b2 = jnp.reshape(b2, (1, NUM_CLASSES)).astype(jnp.float32)

    w1p = jnp.zeros((INPUT_SIZE, HIDDEN_PAD), jnp.bfloat16).at[:, :HIDDEN].set(
        w1.astype(jnp.bfloat16))
    b1p = jnp.zeros((1, HIDDEN_PAD), jnp.float32).at[:, :HIDDEN].set(b1)
    w2p = jnp.zeros((HIDDEN_PAD, OUT_PAD), jnp.bfloat16).at[:HIDDEN, :NUM_CLASSES].set(
        w2.astype(jnp.bfloat16))
    b2p = jnp.zeros((1, OUT_PAD), jnp.float32).at[:, :NUM_CLASSES].set(b2)

    # Pad batch to a multiple of the row tile (tile capped at the padded batch).
    bp = _round_up(batch, 8)
    tb_eff = min(tb, bp)
    bp = _round_up(bp, tb_eff)
    xb = jnp.zeros((bp, INPUT_SIZE), jnp.bfloat16).at[:batch, :].set(
        x.astype(jnp.bfloat16))

    grid = (bp // tb_eff,)

    cost = pl.CostEstimate(
        flops=2 * batch * (INPUT_SIZE * HIDDEN + HIDDEN * NUM_CLASSES),
        transcendentals=0,
        bytes_accessed=(batch * (INPUT_SIZE * 2 + NUM_CLASSES * 4)
                        + INPUT_SIZE * HIDDEN * 2 + HIDDEN * NUM_CLASSES * 2
                        + (HIDDEN + NUM_CLASSES) * 4),
    )

    out_padded = pl.pallas_call(
        mlp_kernel,
        out_shape=jax.ShapeDtypeStruct((bp, OUT_PAD), jnp.float32),
        grid=grid,
        in_specs=[
            pl.BlockSpec((tb_eff, INPUT_SIZE), lambda i: (i, 0)),   # x: streamed
            pl.BlockSpec((INPUT_SIZE, HIDDEN_PAD), lambda i: (0, 0)),  # w1: resident
            pl.BlockSpec((1, HIDDEN_PAD), lambda i: (0, 0)),           # b1: resident
            pl.BlockSpec((HIDDEN_PAD, OUT_PAD), lambda i: (0, 0)),     # w2: resident
            pl.BlockSpec((1, OUT_PAD), lambda i: (0, 0)),              # b2: resident
        ],
        out_specs=pl.BlockSpec((tb_eff, OUT_PAD), lambda i: (i, 0)),
        compiler_params=pltpu.CompilerParams(
            dimension_semantics=("parallel",)),
        cost_estimate=cost,
    )(xb, w1p, b1p, w2p, b2p)

    return out_padded[:batch, :NUM_CLASSES]


def init_params(key):
    # Deterministic init mimicking torch.nn.Linear default:
    # U(-1/sqrt(fan_in), 1/sqrt(fan_in)). Stored as (in, out) so y = x @ W + b.
    k1, k2, k3, k4 = jax.random.split(key, 4)
    bound1 = 1.0 / jnp.sqrt(jnp.float32(INPUT_SIZE))
    bound2 = 1.0 / jnp.sqrt(jnp.float32(HIDDEN))
    w1 = jax.random.uniform(k1, (INPUT_SIZE, HIDDEN), jnp.float32, -bound1, bound1)
    b1 = jax.random.uniform(k2, (1, HIDDEN), jnp.float32, -bound1, bound1)
    w2 = jax.random.uniform(k3, (HIDDEN, NUM_CLASSES), jnp.float32, -bound2, bound2)
    b2 = jax.random.uniform(k4, (1, NUM_CLASSES), jnp.float32, -bound2, bound2)
    return w1, b1, w2, b2


def reference_forward(x, w1, b1, w2, b2):
    # Mirrors the kernel's numerics: bf16 operands, f32 accumulation.
    xb = x.astype(jnp.bfloat16).astype(jnp.float32)
    w1b = w1.astype(jnp.bfloat16).astype(jnp.float32)
    w2b = w2.astype(jnp.bfloat16).astype(jnp.float32)
    h = jnp.maximum(xb @ w1b + b1, 0.0)
    hb = h.astype(jnp.bfloat16).astype(jnp.float32)
    return hb @ w2b + b2


if __name__ == "__main__":
    key = jax.random.PRNGKey(0)
    kx, kp = jax.random.split(key)

    batch = 8
    x = jax.random.normal(kx, (batch, INPUT_SIZE), jnp.float32)
    w1, b1, w2, b2 = init_params(kp)

    out = nn_forward(x, w1, b1, w2, b2)
    out = jax.block_until_ready(out)

    ref = reference_forward(x, w1, b1, w2, b2)
    assert out.shape == (batch, NUM_CLASSES), out.shape
    assert jnp.allclose(out, ref, atol=1e-3, rtol=1e-3), float(
        jnp.max(jnp.abs(out - ref)))

    print("KERNEL_OK")
</pallas_src>

<mosaic_0001>
module attributes {stable_mosaic.version = 11 : i64} {
  func.func @mlp_kernel(%arg0: i32, %arg1: memref<8x22xbf16, #tpu.memory_space<vmem>>, %arg2: memref<22x128xbf16, #tpu.memory_space<vmem>>, %arg3: memref<1x128xf32, #tpu.memory_space<vmem>>, %arg4: memref<128x128xbf16, #tpu.memory_space<vmem>>, %arg5: memref<1x128xf32, #tpu.memory_space<vmem>>, %arg6: memref<8x128xf32, #tpu.memory_space<vmem>>) attributes {dimension_semantics = [#tpu.dimension_semantics<parallel>], iteration_bounds = array<i64: 1>, scalar_prefetch = 0 : i64, scratch_operands = 0 : i64, tpu.core_type = #tpu.core_type<tc>, window_params = [{transform_indices = @transform_0, window_bounds = array<i64: 8, 22>}, {pipeline_mode = #tpu.pipeline_mode<synchronous>, transform_indices = @transform_1, window_bounds = array<i64: 22, 128>}, {pipeline_mode = #tpu.pipeline_mode<synchronous>, transform_indices = @transform_2, window_bounds = array<i64: 1, 128>}, {pipeline_mode = #tpu.pipeline_mode<synchronous>, transform_indices = @transform_3, window_bounds = array<i64: 128, 128>}, {pipeline_mode = #tpu.pipeline_mode<synchronous>, transform_indices = @transform_4, window_bounds = array<i64: 1, 128>}, {transform_indices = @transform_5, window_bounds = array<i64: 8, 128>}]} {
    %c0 = arith.constant 0 : index
    %c0_0 = arith.constant 0 : index
    %0 = vector.load %arg1[%c0, %c0_0] : memref<8x22xbf16, #tpu.memory_space<vmem>>, vector<8x22xbf16>
    %c0_1 = arith.constant 0 : index
    %c0_2 = arith.constant 0 : index
    %1 = vector.load %arg2[%c0_1, %c0_2] : memref<22x128xbf16, #tpu.memory_space<vmem>>, vector<22x128xbf16>
    %cst = arith.constant dense<0.000000e+00> : vector<8x128xf32>
    %2 = tpu.matmul %0, %1, %cst {dimension_numbers = #tpu.dot_dimension_numbers<[1], [0], [0], [1], [0, 0, 1, 1], [], []>} : vector<8x22xbf16>, vector<22x128xbf16>, vector<8x128xf32> -> vector<8x128xf32>
    %c0_3 = arith.constant 0 : index
    %c0_4 = arith.constant 0 : index
    %3 = vector.load %arg3[%c0_3, %c0_4] : memref<1x128xf32, #tpu.memory_space<vmem>>, vector<1x128xf32>
    %4 = vector.broadcast %3 : vector<1x128xf32> to vector<8x128xf32>
    %5 = arith.addf %2, %4 : vector<8x128xf32>
    %cst_5 = arith.constant 0.000000e+00 : f32
    %6 = vector.broadcast %cst_5 : f32 to vector<8x128xf32>
    %7 = arith.maximumf %5, %6 : vector<8x128xf32>
    %8 = arith.truncf %7 : vector<8x128xf32> to vector<8x128xbf16>
    %c0_6 = arith.constant 0 : index
    %c0_7 = arith.constant 0 : index
    %9 = vector.load %arg4[%c0_6, %c0_7] : memref<128x128xbf16, #tpu.memory_space<vmem>>, vector<128x128xbf16>
    %cst_8 = arith.constant dense<0.000000e+00> : vector<8x128xf32>
    %10 = tpu.matmul %8, %9, %cst_8 {dimension_numbers = #tpu.dot_dimension_numbers<[1], [0], [0], [1], [0, 0, 1, 1], [], []>} : vector<8x128xbf16>, vector<128x128xbf16>, vector<8x128xf32> -> vector<8x128xf32>
    %c0_9 = arith.constant 0 : index
    %c0_10 = arith.constant 0 : index
    %11 = vector.load %arg5[%c0_9, %c0_10] : memref<1x128xf32, #tpu.memory_space<vmem>>, vector<1x128xf32>
    %12 = vector.broadcast %11 : vector<1x128xf32> to vector<8x128xf32>
    %13 = arith.addf %10, %12 : vector<8x128xf32>
    %c0_11 = arith.constant 0 : index
    %c0_12 = arith.constant 0 : index
    %14 = vector.load %arg6[%c0_11, %c0_12] : memref<8x128xf32, #tpu.memory_space<vmem>>, vector<8x128xf32>
    tpu.vector_store %arg6[%c0_11, %c0_12], %13 {strides = array<i32>} : memref<8x128xf32, #tpu.memory_space<vmem>>, vector<8x128xf32>,
    return
  }
  func.func @transform_0(%arg0: i32) -> (i32, i32) {
    %c0_i32 = arith.constant 0 : i32
    %c0_i32_0 = arith.constant 0 : i32
    return %arg0, %c0_i32 : i32, i32
  }
  func.func @transform_1(%arg0: i32) -> (i32, i32) {
    %c0_i32 = arith.constant 0 : i32
    %c0_i32_0 = arith.constant 0 : i32
    %c0_i32_1 = arith.constant 0 : i32
    return %c0_i32, %c0_i32_0 : i32, i32
  }
  func.func @transform_2(%arg0: i32) -> (i32, i32) {
    %c0_i32 = arith.constant 0 : i32
    %c0_i32_0 = arith.constant 0 : i32
    %c0_i32_1 = arith.constant 0 : i32
    return %c0_i32, %c0_i32_0 : i32, i32
  }
  func.func @transform_3(%arg0: i32) -> (i32, i32) {
    %c0_i32 = arith.constant 0 : i32
    %c0_i32_0 = arith.constant 0 : i32
    %c0_i32_1 = arith.constant 0 : i32
    return %c0_i32, %c0_i32_0 : i32, i32
  }
  func.func @transform_4(%arg0: i32) -> (i32, i32) {
    %c0_i32 = arith.constant 0 : i32
    %c0_i32_0 = arith.constant 0 : i32
    %c0_i32_1 = arith.constant 0 : i32
    return %c0_i32, %c0_i32_0 : i32, i32
  }
  func.func @transform_5(%arg0: i32) -> (i32, i32) {
    %c0_i32 = arith.constant 0 : i32
    %c0_i32_0 = arith.constant 0 : i32
    return %arg0, %c0_i32 : i32, i32
  }
}

</mosaic_0001>

<llo_original>
// kernel: nn_forward.1
$region0: #{nn_forward.1}
  #allocation0 [shape = 'u32[]', space=smem, size = 0x4, offset = 0x4, fixed_abs, tag = 'smem constant byte address 0x4 - core index']
  #allocation1 [shape = 'u32[144,128]{1,0:T(1,128)}', space=vmem, size = 0x12000, scoped, tag = 'internal scratch']
  %s0 = inlined_call_operand.vmem [shape: bf16[8,22], index: 0, kind: input, shape index: {}]
  %s1 = inlined_call_operand.vmem [shape: bf16[22,128], index: 1, kind: input, shape index: {}]
  %s2 = inlined_call_operand.vmem [shape: f32[1,128], index: 2, kind: input, shape index: {}]
  %s3 = inlined_call_operand.vmem [shape: bf16[128,128], index: 3, kind: input, shape index: {}]
  %s4 = inlined_call_operand.vmem [shape: f32[1,128], index: 4, kind: input, shape index: {}]
  %s5 = inlined_call_operand.hbm [shape: f32[8,128], index: 5, kind: output, shape index: {}]
  %s6 = sld [smem:[#allocation0]]
  $region30: #{nn_forward.1} parent=0
    _
  %s8 = ssub.s32 1, %s6
  %s9 = scalar_select 0, %s8, %s6
  $region1: #{nn_forward.1} parent=0
    #allocation2 [shape = 'u8[4096]{0}', space=vmem, size = 0x1000, scoped, tag = 'output window, operand 0, single buffered']
    #allocation3 [shape = 's32[1]{0}', space=sflag, size = 0x4, scoped, tag = 'scoped memory for nn_forward.1']
    %10 = vsyncpa [#allocation3], 0
    // Predicated region
    $region2: #{nn_forward.1} parent=1 // pred_check
      _
    $region3: #{nn_forward.1} parent=1 // pred_check_branch
      %12 = sbr.rel (0) target = $region5
    $region4: #{nn_forward.1} parent=1 // pred_region
      _
    $region5: #{nn_forward.1} parent=1 // pred_fallthru
      _
    // Predicated region
    $region6: #{nn_forward.1} parent=1 // pred_check
      _
    $region7: #{nn_forward.1} parent=1 // pred_check_branch
      %14 = sbr.rel (0) target = $region9
    $region8: #{nn_forward.1} parent=1 // pred_region
      _
    $region9: #{nn_forward.1} parent=1 // pred_fallthru
      _
    // Predicated region
    $region10: #{nn_forward.1} parent=1 // pred_check
      _
    $region11: #{nn_forward.1} parent=1 // pred_check_branch
      %16 = sbr.rel (0) target = $region13
    $region12: #{nn_forward.1} parent=1 // pred_region
      _
    $region13: #{nn_forward.1} parent=1 // pred_fallthru
      _
    // Predicated region
    $region14: #{nn_forward.1} parent=1 // pred_check
      _
    $region15: #{nn_forward.1} parent=1 // pred_check_branch
      %18 = sbr.rel (0) target = $region17
    $region16: #{nn_forward.1} parent=1 // pred_region
      _
    $region17: #{nn_forward.1} parent=1 // pred_fallthru
      _
    // Predicated region
    $region18: #{nn_forward.1} parent=1 // pred_check
      _
    $region19: #{nn_forward.1} parent=1 // pred_check_branch
      %20 = sbr.rel (0) target = $region21
    $region20: #{nn_forward.1} parent=1 // pred_region
      _
    $region21: #{nn_forward.1} parent=1 // pred_fallthru
      _
    %v22 = vld [vmem:[%s0] sm:$0xf]
    %v23 = vld [vmem:[%s1] sm:$0xf]
    %v24 = vld [vmem:[%s1 + $0x4] sm:$0xf]
    %v25 = vld [vmem:[%s1 + $0x8] sm:$0x7]
    %v26 = vld [vmem:[%s2] sm:$0x1]
    %v28 = vlaneseq
    %v29 = vshrl.u32 %v28, 7
    %v30 = vsub.s32 0, %v29
    %v31 = vrot.slane %v26, %v30
    %v36 = vunpack.c.l.b16 %v23
    %v37 = vunpack.c.l.b16 %v24
    %v38 = vunpack.c.l.b16 %v25
    %v39 = vpack.c.b16 %v37, %v36
    %v40 = vpack.c.b16 %v38, %v38
    %vm42 = vcmask 179200
    %v44 = vsel %vm42, %v22, 0
    %vm46 = vcmask 1042432
    %v48 = vsel %vm46, %v40, 0
    %50 = vmatprep.subr.bf16.mxu0 0
    %51 = vmatpush1.bf16.msra.mxu0 0
    %52 = vmatprep.subr.bf16.mxu0 0
    %53 = vmatpush1.bf16.msra.mxu0 0
    %54 = vmatprep.subr.bf16.mxu0 0
    %55 = vmatpush1.bf16.msra.mxu0 0
    %56 = vmatprep.subr.bf16.mxu0 0
    %57 = vmatpush1.bf16.msra.mxu0 0
    %58 = vmatprep.subr.bf16.mxu0 0
    %59 = vmatpush1.bf16.msra.mxu0 0
    %60 = vmatprep.subr.bf16.mxu0 0
    %61 = vmatpush1.bf16.msra.mxu0 0
    %62 = vmatprep.subr.bf16.mxu0 0
    %63 = vmatpush1.bf16.msra.mxu0 %v48
    %64 = vmatprep.subr.bf16.mxu0 0
    %65 = vmatpush1.bf16.msra.mxu0 %v39
    %66 = vmatprep.subr.bf16.mxu0 0
    %67 = vmatpush2.bf16.msra.mxu0 0
    %68 = vmatprep.subr.bf16.mxu0 0
    %69 = vmatpush2.bf16.msra.mxu0 0
    %70 = vmatprep.subr.bf16.mxu0 0
    %71 = vmatpush2.bf16.msra.mxu0 0
    %72 = vmatprep.subr.bf16.mxu0 0
    %73 = vmatpush2.bf16.msra.mxu0 0
    %74 = vmatprep.subr.bf16.mxu0 0
    %75 = vmatpush2.bf16.msra.mxu0 0
    %76 = vmatprep.subr.bf16.mxu0 0
    %77 = vmatpush2.bf16.msra.mxu0 0
    %78 = vmatprep.subr.bf16.mxu0 0
    %79 = vmatpush2.bf16.msra.mxu0 0
    %80 = vmatprep.subr.bf16.mxu0 0
    %81 = vmatpush2.bf16.msra.mxu0 0
    %82 = vmatprep.mubr.bf16.mxu0 0
    %83 = vmatmul.mubr.bf16.gmra.mxu0 %v44
    %v84 = vpop.f32.mrf.mxu0
    %v85 = vadd.f32 %v31, %v84
    %v86 = vpop.f32.mrf.mxu0
    %v87 = vpop.f32.mrf.mxu0
    %v88 = vpop.f32.mrf.mxu0
    %89 = vdwg.mxu0
    %v90 = vmax.f32 %v85, 0.0
    %v91 = vpack.c.bf16 %v90, %v90
    %v92 = vld [vmem:[%s3] sm:$0xf]
    %v93 = vld [vmem:[%s3 + $0x4] sm:$0xf]
    %v94 = vld [vmem:[%s3 + $0x8] sm:$0xf]
    %v95 = vld [vmem:[%s3 + $0xc] sm:$0xf]
    %v96 = vld [vmem:[%s3 + $0x10] sm:$0xf]
    %v97 = vld [vmem:[%s3 + $0x14] sm:$0xf]
    %v98 = vld [vmem:[%s3 + $0x18] sm:$0xf]
    %v99 = vld [vmem:[%s3 + $0x1c] sm:$0xf]
    %v100 = vld [vmem:[%s3 + $0x20] sm:$0xf]
    %v101 = vld [vmem:[%s3 + $0x24] sm:$0xf]
    %v102 = vld [vmem:[%s3 + $0x28] sm:$0xf]
    %v103 = vld [vmem:[%s3 + $0x2c] sm:$0xf]
    %v104 = vld [vmem:[%s3 + $0x30] sm:$0xf]
    %v105 = vld [vmem:[%s3 + $0x34] sm:$0xf]
    %v106 = vld [vmem:[%s3 + $0x38] sm:$0xf]
    %v107 = vld [vmem:[%s3 + $0x3c] sm:$0xf]
    %v108 = vld [vmem:[%s4] sm:$0x1]
    %v110 = vlaneseq
    %v111 = vshrl.u32 %v110, 7
    %v112 = vsub.s32 0, %v111
    %v113 = vrot.slane %v108, %v112
    %v131 = vunpack.c.l.b16 %v92
    %v132 = vunpack.c.l.b16 %v93
    %v133 = vunpack.c.l.b16 %v94
    %v134 = vunpack.c.l.b16 %v95
    %v135 = vunpack.c.l.b16 %v96
    %v136 = vunpack.c.l.b16 %v97
    %v137 = vunpack.c.l.b16 %v98
    %v138 = vunpack.c.l.b16 %v99
    %v139 = vunpack.c.l.b16 %v100
    %v140 = vunpack.c.l.b16 %v101
    %v141 = vunpack.c.l.b16 %v102
    %v142 = vunpack.c.l.b16 %v103
    %v143 = vunpack.c.l.b16 %v104
    %v144 = vunpack.c.l.b16 %v105
    %v145 = vunpack.c.l.b16 %v106
    %v146 = vunpack.c.l.b16 %v107
    %v147 = vpack.c.b16 %v132, %v131
    %v148 = vpack.c.b16 %v134, %v133
    %v149 = vpack.c.b16 %v136, %v135
    %v150 = vpack.c.b16 %v138, %v137
    %v151 = vpack.c.b16 %v140, %v139
    %v152 = vpack.c.b16 %v142, %v141
    %v153 = vpack.c.b16 %v144, %v143
    %v154 = vpack.c.b16 %v146, %v145
    %163 = vmatprep.subr.bf16.mxu0 0
    %164 = vmatpush1.bf16.msra.mxu0 %v154
    %165 = vmatprep.subr.bf16.mxu0 0
    %166 = vmatpush1.bf16.msra.mxu0 %v153
    %167 = vmatprep.subr.bf16.mxu0 0
    %168 = vmatpush1.bf16.msra.mxu0 %v152
    %169 = vmatprep.subr.bf16.mxu0 0
    %170 = vmatpush1.bf16.msra.mxu0 %v151
    %171 = vmatprep.subr.bf16.mxu0 0
    %172 = vmatpush1.bf16.msra.mxu0 %v150
    %173 = vmatprep.subr.bf16.mxu0 0
    %174 = vmatpush1.bf16.msra.mxu0 %v149
    %175 = vmatprep.subr.bf16.mxu0 0
    %176 = vmatpush1.bf16.msra.mxu0 %v148
    %177 = vmatprep.subr.bf16.mxu0 0
    %178 = vmatpush1.bf16.msra.mxu0 %v147
    %179 = vmatprep.subr.bf16.mxu0 0
    %180 = vmatpush2.bf16.msra.mxu0 0
    %181 = vmatprep.subr.bf16.mxu0 0
    %182 = vmatpush2.bf16.msra.mxu0 0
    %183 = vmatprep.subr.bf16.mxu0 0
    %184 = vmatpush2.bf16.msra.mxu0 0
    %185 = vmatprep.subr.bf16.mxu0 0
    %186 = vmatpush2.bf16.msra.mxu0 0
    %187 = vmatprep.subr.bf16.mxu0 0
    %188 = vmatpush2.bf16.msra.mxu0 0
    %189 = vmatprep.subr.bf16.mxu0 0
    %190 = vmatpush2.bf16.msra.mxu0 0
    %191 = vmatprep.subr.bf16.mxu0 0
    %192 = vmatpush2.bf16.msra.mxu0 0
    %193 = vmatprep.subr.bf16.mxu0 0
    %194 = vmatpush2.bf16.msra.mxu0 0
    %195 = vmatprep.mubr.bf16.mxu0 0
    %196 = vmatmul.mubr.bf16.gmra.mxu0 %v91
    %v197 = vpop.f32.mrf.mxu0
    %v198 = vadd.f32 %v113, %v197
    %v199 = vpop.f32.mrf.mxu0
    %v200 = vpop.f32.mrf.mxu0
    %v201 = vpop.f32.mrf.mxu0
    %202 = vdwg.mxu0
    %203 = vst [vmem:[#allocation2] sm:$0xff] %v198
    // Predicated region
    $region22: #{nn_forward.1} parent=1 // pred_check
      _
    $region23: #{nn_forward.1} parent=1 // pred_check_branch
      %205 = sbr.rel (0) target = $region25
    $region24: #{nn_forward.1} parent=1 // pred_region
      %s207 = ssub.s32 128, 128
      %208 = vsyncadd [#allocation3], %s207
      %s210 = sshll.u32 [#allocation2], 4
      %s211 = int_to_ptr.vmem [resolvable:$true] %s210
      %213 = dma.vmem_to_hbm [thread:$0]  %s211, 128, %s5, [#allocation3]
    $region25: #{nn_forward.1} parent=1 // pred_fallthru
      _
    // Predicated region
    $region26: #{nn_forward.1} parent=1 // pred_check
      _
    $region27: #{nn_forward.1} parent=1 // pred_check_branch
      %215 = sbr.rel (0) target = $region29
    $region28: #{nn_forward.1} parent=1 // pred_region
      %216 = dma.done [#allocation3], 128
    $region29: #{nn_forward.1} parent=1 // pred_fallthru
      _
    %217 = vsyncpa [#allocation3], 1

</llo_original>
